<compile_context>
chip_gen: v6e
topology: v6e:2x2x1
jax: 0.10.0
libtpu: 0.0.40
codegen_flags: <defaults>
</compile_context>

<pallas_src>
import functools

import jax
import jax.numpy as jnp
from jax.experimental import pallas as pl
from jax.experimental.pallas import tpu as pltpu


def _pool_att_kernel(x_ref, w1t_ref, b1_ref, w2_ref, b2_ref, att_ref, acc_ref,
                     *, inv_hw, hw, tile, needs_mask):
    """Pass 1: global average pool + tiny channel MLP -> attention (C, 1)."""
    k = pl.program_id(1)

    @pl.when(k == 0)
    def _():
        acc_ref[...] = jnp.zeros_like(acc_ref)

    x = x_ref[0]                                                  # (C, tile)
    if needs_mask:
        # Ragged tail: lanes past HW in the (partial) last block hold
        # undefined data; zero them before accumulating.  Static branch, so
        # the aligned path pays nothing.
        lane = jax.lax.broadcasted_iota(jnp.int32, x.shape, 1)
        x = jnp.where(lane + k * tile < hw, x, jnp.zeros_like(x))

    # Partial sum over this spatial tile with f32 accumulation; no full-tile
    # f32 temporary is kept around.
    acc_ref[...] += jnp.sum(x, axis=1, keepdims=True, dtype=jnp.float32)

    @pl.when(k == pl.num_programs(1) - 1)
    def _():
        pooled = acc_ref[...] * inv_hw                            # (C, 1) f32
        # 1x1 convs as VPU broadcast-multiply + XLU reduce.
        w1t = w1t_ref[...].astype(jnp.float32)                    # (C, Cr)
        h = jnp.sum(w1t * pooled, axis=0, keepdims=True)          # (1, Cr)
        h = jnp.maximum(h + b1_ref[...].astype(jnp.float32), 0.0)
        w2 = w2_ref[...].astype(jnp.float32)                      # (C, Cr)
        z = jnp.sum(w2 * h, axis=1, keepdims=True)                # (C, 1)
        att_ref[0] = jax.nn.sigmoid(z + b2_ref[...].astype(jnp.float32))


def _scale_kernel(x_ref, att_ref, o_ref):
    """Pass 2: out = x * att, attention broadcast over the spatial (lane) axis."""
    att = att_ref[0].astype(o_ref.dtype)                          # (C, 1)
    o_ref[0] = x_ref[0] * att                                     # (C, tile)


def _pick_hw_tile(hw, c, itemsize, max_block_bytes=4 << 20):
    """Lane tile: multiple of 128, <= ceil128(HW), block (C, tile) <= ~4 MiB."""
    hw_pad = ((hw + 127) // 128) * 128
    cap = (max_block_bytes // max(1, c * itemsize)) // 128 * 128
    cap = max(128, cap)
    return min(cap, hw_pad)


def ca_layer(x, w1, b1, w2, b2):
    """x: (N, C, H, W); w1: (Cr, C); b1: (Cr,); w2: (C, Cr); b2: (C,)."""
    N, C, H, W = x.shape
    Cr = w1.shape[0]
    HW = H * W
    itemsize = jnp.dtype(x.dtype).itemsize

    tile = _pick_hw_tile(HW, C, itemsize)
    n_tiles = (HW + tile - 1) // tile
    needs_mask = (HW % tile) != 0

    x_flat = x.reshape(N, C, HW)        # contiguous reshape: no HBM copy

    w1t = jnp.transpose(w1)             # (C, Cr): channel axis on sublanes
    b1_2d = b1.reshape(1, Cr)
    w2_2d = w2                          # (C, Cr)
    b2_2d = b2.reshape(C, 1)

    cparams = dict(vmem_limit_bytes=32 << 20)

    # ---- pass 1: pooled mean + attention vector ------------------------
    att = pl.pallas_call(
        functools.partial(_pool_att_kernel, inv_hw=float(1.0 / HW), hw=HW,
                          tile=tile, needs_mask=needs_mask),
        out_shape=jax.ShapeDtypeStruct((N, C, 1), jnp.float32),
        grid_spec=pltpu.PrefetchScalarGridSpec(
            num_scalar_prefetch=0,
            grid=(N, n_tiles),
            in_specs=[
                pl.BlockSpec((1, C, tile), lambda n, k: (n, 0, k)),   # x tile
                pl.BlockSpec((C, Cr), lambda n, k: (0, 0)),           # W1^T
                pl.BlockSpec((1, Cr), lambda n, k: (0, 0)),           # b1
                pl.BlockSpec((C, Cr), lambda n, k: (0, 0)),           # W2
                pl.BlockSpec((C, 1), lambda n, k: (0, 0)),            # b2
            ],
            out_specs=pl.BlockSpec((1, C, 1), lambda n, k: (n, 0, 0)),
            scratch_shapes=[pltpu.VMEM((C, 1), jnp.float32)],
        ),
        compiler_params=pltpu.CompilerParams(
            dimension_semantics=("parallel", "arbitrary"), **cparams),
        cost_estimate=pl.CostEstimate(
            flops=N * C * HW + 4 * N * C * Cr,
            transcendentals=N * C,
            bytes_accessed=N * C * HW * itemsize + N * C * 4
                           + (2 * C * Cr + Cr + C) * 4),
    )(x_flat, w1t, b1_2d, w2_2d, b2_2d)

    # ---- pass 2: out = x * att (pure HBM streaming) ---------------------
    out_flat = pl.pallas_call(
        _scale_kernel,
        out_shape=jax.ShapeDtypeStruct((N, C, HW), x.dtype),
        grid_spec=pltpu.PrefetchScalarGridSpec(
            num_scalar_prefetch=0,
            grid=(N, n_tiles),
            in_specs=[
                pl.BlockSpec((1, C, tile), lambda n, k: (n, 0, k)),   # x tile
                pl.BlockSpec((1, C, 1), lambda n, k: (n, 0, 0)),      # att
            ],
            out_specs=pl.BlockSpec((1, C, tile), lambda n, k: (n, 0, k)),
        ),
        compiler_params=pltpu.CompilerParams(
            dimension_semantics=("parallel", "parallel"),   # megacore on v7x
            **cparams),
        cost_estimate=pl.CostEstimate(
            flops=N * C * HW,
            transcendentals=0,
            bytes_accessed=2 * N * C * HW * itemsize + N * C * 4),
    )(x_flat, att)

    return out_flat.reshape(N, C, H, W)


def ca_layer_ref(x, w1, b1, w2, b2):
    """Pure-JAX reference matching the PyTorch forward."""
    pooled = jnp.mean(x, axis=(2, 3))                        # (N, C)
    h = jnp.maximum(pooled @ w1.T + b1[None, :], 0.0)        # (N, Cr)
    att = jax.nn.sigmoid(h @ w2.T + b2[None, :])             # (N, C)
    return x * att[:, :, None, None]


if __name__ == "__main__":
    N, C, reduction = 2, 16, 8
    Cr = C // reduction

    key = jax.random.PRNGKey(0)
    kx, k1, k2, k3, k4, kx2 = jax.random.split(key, 6)

    # Conv2d(channel, channel//r, 1) weight core is (Cr, C); the second is (C, Cr).
    w1 = 0.1 * jax.random.normal(k1, (Cr, C), dtype=jnp.float32)
    b1 = 0.1 * jax.random.normal(k2, (Cr,), dtype=jnp.float32)
    w2 = 0.1 * jax.random.normal(k3, (C, Cr), dtype=jnp.float32)
    b2 = 0.1 * jax.random.normal(k4, (C,), dtype=jnp.float32)

    # Case 1: HW is a multiple of 128 (fully aligned path, no masking).
    x = jax.random.normal(kx, (N, C, 16, 16), dtype=jnp.float32)
    out = jax.block_until_ready(ca_layer(x, w1, b1, w2, b2))
    ref = ca_layer_ref(x, w1, b1, w2, b2)
    assert out.shape == ref.shape
    assert jnp.allclose(out, ref, atol=1e-5, rtol=1e-5)

    # Case 2: ragged spatial size (exercises the masked partial-block path).
    x2 = jax.random.normal(kx2, (N, C, 7, 9), dtype=jnp.float32)
    out2 = jax.block_until_ready(ca_layer(x2, w1, b1, w2, b2))
    ref2 = ca_layer_ref(x2, w1, b1, w2, b2)
    assert out2.shape == ref2.shape
    assert jnp.allclose(out2, ref2, atol=1e-5, rtol=1e-5)

    print("KERNEL_OK")
</pallas_src>

<mosaic_0001>
module attributes {stable_mosaic.version = 11 : i64} {
  func.func @_pool_att_kernel(%arg0: i32, %arg1: i32, %arg2: memref<1x16x256xf32, #tpu.memory_space<vmem>>, %arg3: memref<16x2xf32, #tpu.memory_space<vmem>>, %arg4: memref<1x2xf32, #tpu.memory_space<vmem>>, %arg5: memref<16x2xf32, #tpu.memory_space<vmem>>, %arg6: memref<16x1xf32, #tpu.memory_space<vmem>>, %arg7: memref<1x16x1xf32, #tpu.memory_space<vmem>>, %arg8: memref<16x1xf32, #tpu.memory_space<vmem>>) attributes {dimension_semantics = [#tpu.dimension_semantics<parallel>, #tpu.dimension_semantics<arbitrary>], iteration_bounds = array<i64: 2, 1>, scalar_prefetch = 0 : i64, scratch_operands = 1 : i64, tpu.core_type = #tpu.core_type<tc>, window_params = [{transform_indices = @transform_0, window_bounds = array<i64: 1, 16, 256>}, {pipeline_mode = #tpu.pipeline_mode<synchronous>, transform_indices = @transform_1, window_bounds = array<i64: 16, 2>}, {pipeline_mode = #tpu.pipeline_mode<synchronous>, transform_indices = @transform_2, window_bounds = array<i64: 1, 2>}, {pipeline_mode = #tpu.pipeline_mode<synchronous>, transform_indices = @transform_3, window_bounds = array<i64: 16, 2>}, {pipeline_mode = #tpu.pipeline_mode<synchronous>, transform_indices = @transform_4, window_bounds = array<i64: 16, 1>}, {transform_indices = @transform_5, window_bounds = array<i64: 1, 16, 1>}]} {
    %c0_i32 = arith.constant 0 : i32
    %0 = arith.cmpi eq, %arg1, %c0_i32 : i32
    %1 = arith.extui %0 : i1 to i32
    %c0_i32_0 = arith.constant 0 : i32
    %2 = arith.cmpi ne, %1, %c0_i32_0 : i32
    scf.if %2 {
      %cst_9 = arith.constant 0.000000e+00 : f32
      %13 = vector.broadcast %cst_9 : f32 to vector<16x1xf32>
      %c0_10 = arith.constant 0 : index
      %c0_11 = arith.constant 0 : index
      %14 = vector.load %arg8[%c0_10, %c0_11] : memref<16x1xf32, #tpu.memory_space<vmem>>, vector<16x1xf32>
      tpu.vector_store %arg8[%c0_10, %c0_11], %13 {strides = array<i32>} : memref<16x1xf32, #tpu.memory_space<vmem>>, vector<16x1xf32>,
    } else {
    }
    %c0 = arith.constant 0 : index
    %c0_1 = arith.constant 0 : index
    %c0_2 = arith.constant 0 : index
    %3 = vector.load %arg2[%c0, %c0_1, %c0_2] : memref<1x16x256xf32, #tpu.memory_space<vmem>>, vector<1x16x256xf32>
    %4 = vector.shape_cast %3 : vector<1x16x256xf32> to vector<16x256xf32>
    %c0_3 = arith.constant 0 : index
    %c0_4 = arith.constant 0 : index
    %5 = vector.load %arg8[%c0_3, %c0_4] : memref<16x1xf32, #tpu.memory_space<vmem>>, vector<16x1xf32>
    %cst = arith.constant dense<0.000000e+00> : vector<16xf32>
    %6 = vector.multi_reduction <add>, %4, %cst [1] : vector<16x256xf32> to vector<16xf32>
    %7 = vector.shape_cast %6 : vector<16xf32> to vector<16x1xf32>
    %8 = arith.addf %5, %7 : vector<16x1xf32>
    %c0_5 = arith.constant 0 : index
    %c0_6 = arith.constant 0 : index
    %9 = vector.load %arg8[%c0_5, %c0_6] : memref<16x1xf32, #tpu.memory_space<vmem>>, vector<16x1xf32>
    tpu.vector_store %arg8[%c0_5, %c0_6], %8 {strides = array<i32>} : memref<16x1xf32, #tpu.memory_space<vmem>>, vector<16x1xf32>,
    %c0_i32_7 = arith.constant 0 : i32
    %10 = arith.cmpi eq, %arg1, %c0_i32_7 : i32
    %11 = arith.extui %10 : i1 to i32
    %c0_i32_8 = arith.constant 0 : i32
    %12 = arith.cmpi ne, %11, %c0_i32_8 : i32
    scf.if %12 {
      %c0_9 = arith.constant 0 : index
      %c0_10 = arith.constant 0 : index
      %13 = vector.load %arg8[%c0_9, %c0_10] : memref<16x1xf32, #tpu.memory_space<vmem>>, vector<16x1xf32>
      %cst_11 = arith.constant 3.906250e-03 : f32
      %14 = vector.broadcast %cst_11 : f32 to vector<16x1xf32>
      %15 = arith.mulf %13, %14 : vector<16x1xf32>
      %c0_12 = arith.constant 0 : index
      %c0_13 = arith.constant 0 : index
      %16 = vector.load %arg3[%c0_12, %c0_13] : memref<16x2xf32, #tpu.memory_space<vmem>>, vector<16x2xf32>
      %17 = vector.broadcast %15 : vector<16x1xf32> to vector<16x2xf32>
      %18 = arith.mulf %16, %17 : vector<16x2xf32>
      %cst_14 = arith.constant dense<0.000000e+00> : vector<2xf32>
      %19 = vector.multi_reduction <add>, %18, %cst_14 [0] : vector<16x2xf32> to vector<2xf32>
      %20 = vector.shape_cast %19 : vector<2xf32> to vector<1x2xf32>
      %c0_15 = arith.constant 0 : index
      %c0_16 = arith.constant 0 : index
      %21 = vector.load %arg4[%c0_15, %c0_16] : memref<1x2xf32, #tpu.memory_space<vmem>>, vector<1x2xf32>
      %22 = arith.addf %20, %21 : vector<1x2xf32>
      %cst_17 = arith.constant 0.000000e+00 : f32
      %23 = vector.broadcast %cst_17 : f32 to vector<1x2xf32>
      %24 = arith.maximumf %22, %23 : vector<1x2xf32>
      %c0_18 = arith.constant 0 : index
      %c0_19 = arith.constant 0 : index
      %25 = vector.load %arg5[%c0_18, %c0_19] : memref<16x2xf32, #tpu.memory_space<vmem>>, vector<16x2xf32>
      %26 = vector.broadcast %24 : vector<1x2xf32> to vector<16x2xf32>
      %27 = arith.mulf %25, %26 : vector<16x2xf32>
      %cst_20 = arith.constant dense<0.000000e+00> : vector<16xf32>
      %28 = vector.multi_reduction <add>, %27, %cst_20 [1] : vector<16x2xf32> to vector<16xf32>
      %29 = vector.shape_cast %28 : vector<16xf32> to vector<16x1xf32>
      %c0_21 = arith.constant 0 : index
      %c0_22 = arith.constant 0 : index
      %30 = vector.load %arg6[%c0_21, %c0_22] : memref<16x1xf32, #tpu.memory_space<vmem>>, vector<16x1xf32>
      %31 = arith.addf %29, %30 : vector<16x1xf32>
      %32 = arith.negf %31 : vector<16x1xf32>
      %33 = math.exp %32 : vector<16x1xf32>
      %cst_23 = arith.constant 1.000000e+00 : f32
      %34 = vector.broadcast %cst_23 : f32 to vector<16x1xf32>
      %35 = arith.addf %34, %33 : vector<16x1xf32>
      %36 = arith.divf %34, %35 : vector<16x1xf32>
      %c0_24 = arith.constant 0 : index
      %c0_25 = arith.constant 0 : index
      %c0_26 = arith.constant 0 : index
      %37 = vector.load %arg7[%c0_24, %c0_25, %c0_26] : memref<1x16x1xf32, #tpu.memory_space<vmem>>, vector<1x16x1xf32>
      %38 = vector.shape_cast %37 : vector<1x16x1xf32> to vector<16x1xf32>
      %39 = vector.shape_cast %36 : vector<16x1xf32> to vector<1x16x1xf32>
      tpu.vector_store %arg7[%c0_24, %c0_25, %c0_26], %39 {strides = array<i32>} : memref<1x16x1xf32, #tpu.memory_space<vmem>>, vector<1x16x1xf32>,
    } else {
    }
    return
  }
  func.func @transform_0(%arg0: i32, %arg1: i32) -> (i32, i32, i32) {
    %c0_i32 = arith.constant 0 : i32
    %c0_i32_0 = arith.constant 0 : i32
    return %arg0, %c0_i32, %arg1 : i32, i32, i32
  }
  func.func @transform_1(%arg0: i32, %arg1: i32) -> (i32, i32) {
    %c0_i32 = arith.constant 0 : i32
    %c0_i32_0 = arith.constant 0 : i32
    %c0_i32_1 = arith.constant 0 : i32
    return %c0_i32, %c0_i32_0 : i32, i32
  }
  func.func @transform_2(%arg0: i32, %arg1: i32) -> (i32, i32) {
    %c0_i32 = arith.constant 0 : i32
    %c0_i32_0 = arith.constant 0 : i32
    %c0_i32_1 = arith.constant 0 : i32
    return %c0_i32, %c0_i32_0 : i32, i32
  }
  func.func @transform_3(%arg0: i32, %arg1: i32) -> (i32, i32) {
    %c0_i32 = arith.constant 0 : i32
    %c0_i32_0 = arith.constant 0 : i32
    %c0_i32_1 = arith.constant 0 : i32
    return %c0_i32, %c0_i32_0 : i32, i32
  }
  func.func @transform_4(%arg0: i32, %arg1: i32) -> (i32, i32) {
    %c0_i32 = arith.constant 0 : i32
    %c0_i32_0 = arith.constant 0 : i32
    %c0_i32_1 = arith.constant 0 : i32
    return %c0_i32, %c0_i32_0 : i32, i32
  }
  func.func @transform_5(%arg0: i32, %arg1: i32) -> (i32, i32, i32) {
    %c0_i32 = arith.constant 0 : i32
    %c0_i32_0 = arith.constant 0 : i32
    %c0_i32_1 = arith.constant 0 : i32
    return %arg0, %c0_i32, %c0_i32_0 : i32, i32, i32
  }
}

</mosaic_0001>

<llo_original>
// kernel: tpu_custom_call.1
$region0: #{tpu_custom_call.1}
  #allocation0 [shape = 'u32[]', space=smem, size = 0x4, offset = 0x4, fixed_abs, tag = 'smem constant byte address 0x4 - core index']
  #allocation1 [shape = 'u32[144,128]{1,0:T(1,128)}', space=vmem, size = 0x12000, scoped, tag = 'internal scratch']
  #allocation2 [shape = 'f32[16,1]{1,0:T(8,128)}', space=vmem, size = 0x2000, scoped, tag = 'scratch operand']
  %s0 = inlined_call_operand.hbm [shape: f32[2,16,256], index: 0, kind: input, shape index: {}]
  %s1 = inlined_call_operand.vmem [shape: f32[16,2], index: 1, kind: input, shape index: {}]
  %s2 = inlined_call_operand.vmem [shape: f32[1,2], index: 2, kind: input, shape index: {}]
  %s3 = inlined_call_operand.vmem [shape: f32[16,2], index: 3, kind: input, shape index: {}]
  %s4 = inlined_call_operand.vmem [shape: f32[16,1], index: 4, kind: input, shape index: {}]
  %s5 = inlined_call_operand.vmem [shape: f32[2,16,1], index: 5, kind: output, shape index: {}]
  %s6 = sld [smem:[#allocation0]]
  $region65: #{tpu_custom_call.1} parent=0
    _
  %s8 = ssub.s32 1, %s6
  %s9 = scalar_select 0, %s8, %s6
  $region1: #{tpu_custom_call.1} parent=0
    #allocation3 [shape = 'u8[32768]{0}', space=vmem, size = 0x8000, scoped, tag = 'input window, operand 0']
    #allocation4 [shape = 's32[2]{0}', space=sflag, size = 0x8, scoped, tag = 'scoped memory for tpu_custom_call.1']
    %10 = vsyncpa [#allocation4], 0
    %s11 = scalar_lea.sflag [#allocation4], 1
    %12 = vsyncpa %s11, 0
    loop: start=0, step=1, limit=4
    $region2: #{tpu_custom_call.1} parent=1 // loop_pre_header
      _
    $region3: #{tpu_custom_call.1} parent=1 // loop_header
      %s14 = sphi 0, %s18
      %p15 = scmp.ge.s32.totalorder %s14, 4
      %s21 = sphi 0, %s33
      %s22 = sphi 0, %s29
      %s23 = sphi 0, %s21
      %s24 = sphi 0, %s22
      %s25 = sphi 0, %s23
      %s26 = sphi 0, %s24
      %s38 = sphi 0, %s40
      %s41 = sphi 0, %s38
      %s42 = sphi 0, %s41
      %s58 = sphi 0, %s42
      %s62 = sphi 0, %s62
      %s64 = sphi 0, %s62
      %s65 = sphi 0, %s64
      %s79 = sphi 0, %s65
      %s83 = sphi 0, %s83
      %s85 = sphi 0, %s83
      %s86 = sphi 0, %s85
      %s100 = sphi 0, %s86
      %s104 = sphi 0, %s104
      %s106 = sphi 0, %s104
      %s107 = sphi 0, %s106
      %s121 = sphi 0, %s107
      %s125 = sphi 0, %s125
      %s127 = sphi 0, %s125
      %s128 = sphi 0, %s127
      %s142 = sphi 0, %s128
      %s148 = sphi 0, %s150
      %s151 = sphi 0, %s148
      %s152 = sphi 0, %s151
      %s168 = sphi 0, %s152
    $region4: #{tpu_custom_call.1} parent=1 // loop_header_branch
      %17 = sbr.rel (%p15) target = $region8
    $region5: #{tpu_custom_call.1} parent=1 // loop_body
      %s19 = ssub.s32 %s14, 1
      %s20 = ssub.s32 %s14, 2
      %s27 = sadd.s32 1, %s22
      %p28 = scmp.ge.s32.totalorder %s27, 1
      %s29 = scalar_select %p28, 0, %s27
      %s30 = sadd.s32 1, %s21
      %s31 = scalar_select %p28, %s30, %s21
      %p32 = scmp.ge.s32.totalorder %s31, 2
      %s33 = scalar_select %p32, 0, %s31
      %s34 = ssub.s32 %s21, %s33
      %s35 = ssub.s32 %s22, %s29
      %s36 = sor.u32 %s34, %s35
      %p37 = scmp.eq.s32.totalorder %s36, 0
      %s39 = sadd.s32 %s38, 1
      %s40 = scalar_select %p37, %s38, %s39
      %p43 = pneg %p37
      %p44 = scmp.eq.s32.totalorder %s14, 1
      %p45 = por %p43, %p44
      %p46 = scmp.ne.s32.totalorder %s38, %s41
      %p47 = scmp.eq.s32.totalorder %s14, 0
      %p48 = por %p46, %p47
      %p49 = scmp.ne.s32.totalorder %s38, %s41
      %p50 = scmp.eq.s32.totalorder %s19, 1
      %p51 = por %p49, %p50
      %p52 = scmp.ne.s32.totalorder %s41, %s42
      %p53 = scmp.eq.s32.totalorder %s19, 0
      %p54 = por %p52, %p53
      %p55 = scmp.ne.s32.totalorder %s41, %s42
      %p56 = scmp.eq.s32.totalorder %s20, 1
      %p57 = por %p55, %p56
      %p59 = scmp.ne.s32.totalorder %s42, %s58
      %p60 = scmp.eq.s32.totalorder %s20, 0
      %p61 = por %p59, %p60
      %s63 = sadd.s32 %s62, 1
      %p66 = scmp.eq.s32.totalorder %s14, 1
      %p67 = scmp.ne.s32.totalorder %s62, %s64
      %p68 = scmp.eq.s32.totalorder %s14, 0
      %p69 = por %p67, %p68
      %p70 = scmp.ne.s32.totalorder %s62, %s64
      %p71 = scmp.eq.s32.totalorder %s19, 1
      %p72 = por %p70, %p71
      %p73 = scmp.ne.s32.totalorder %s64, %s65
      %p74 = scmp.eq.s32.totalorder %s19, 0
      %p75 = por %p73, %p74
      %p76 = scmp.ne.s32.totalorder %s64, %s65
      %p77 = scmp.eq.s32.totalorder %s20, 1
      %p78 = por %p76, %p77
      %p80 = scmp.ne.s32.totalorder %s65, %s79
      %p81 = scmp.eq.s32.totalorder %s20, 0
      %p82 = por %p80, %p81
      %s84 = sadd.s32 %s83, 1
      %p87 = scmp.eq.s32.totalorder %s14, 1
      %p88 = scmp.ne.s32.totalorder %s83, %s85
      %p89 = scmp.eq.s32.totalorder %s14, 0
      %p90 = por %p88, %p89
      %p91 = scmp.ne.s32.totalorder %s83, %s85
      %p92 = scmp.eq.s32.totalorder %s19, 1
      %p93 = por %p91, %p92
      %p94 = scmp.ne.s32.totalorder %s85, %s86
      %p95 = scmp.eq.s32.totalorder %s19, 0
      %p96 = por %p94, %p95
      %p97 = scmp.ne.s32.totalorder %s85, %s86
      %p98 = scmp.eq.s32.totalorder %s20, 1
      %p99 = por %p97, %p98
      %p101 = scmp.ne.s32.totalorder %s86, %s100
      %p102 = scmp.eq.s32.totalorder %s20, 0
      %p103 = por %p101, %p102
      %s105 = sadd.s32 %s104, 1
      %p108 = scmp.eq.s32.totalorder %s14, 1
      %p109 = scmp.ne.s32.totalorder %s104, %s106
      %p110 = scmp.eq.s32.totalorder %s14, 0
      %p111 = por %p109, %p110
      %p112 = scmp.ne.s32.totalorder %s104, %s106
      %p113 = scmp.eq.s32.totalorder %s19, 1
      %p114 = por %p112, %p113
      %p115 = scmp.ne.s32.totalorder %s106, %s107
      %p116 = scmp.eq.s32.totalorder %s19, 0
      %p117 = por %p115, %p116
      %p118 = scmp.ne.s32.totalorder %s106, %s107
      %p119 = scmp.eq.s32.totalorder %s20, 1
      %p120 = por %p118, %p119
      %p122 = scmp.ne.s32.totalorder %s107, %s121
      %p123 = scmp.eq.s32.totalorder %s20, 0
      %p124 = por %p122, %p123
      %s126 = sadd.s32 %s125, 1
      %p129 = scmp.eq.s32.totalorder %s14, 1
      %p130 = scmp.ne.s32.totalorder %s125, %s127
      %p131 = scmp.eq.s32.totalorder %s14, 0
      %p132 = por %p130, %p131
      %p133 = scmp.ne.s32.totalorder %s125, %s127
      %p134 = scmp.eq.s32.totalorder %s19, 1
      %p135 = por %p133, %p134
      %p136 = scmp.ne.s32.totalorder %s127, %s128
      %p137 = scmp.eq.s32.totalorder %s19, 0
      %p138 = por %p136, %p137
      %p139 = scmp.ne.s32.totalorder %s127, %s128
      %p140 = scmp.eq.s32.totalorder %s20, 1
      %p141 = por %p139, %p140
      %p143 = scmp.ne.s32.totalorder %s128, %s142
      %p144 = scmp.eq.s32.totalorder %s20, 0
      %p145 = por %p143, %p144
      %s146 = ssub.s32 %s21, %s33
      %p147 = scmp.eq.s32.totalorder %s146, 0
      %s149 = sadd.s32 %s148, 1
      %s150 = scalar_select %p147, %s148, %s149
      %p153 = pneg %p147
      %p154 = scmp.eq.s32.totalorder %s14, 1
      %p155 = por %p153, %p154
      %p156 = scmp.ne.s32.totalorder %s148, %s151
      %p157 = scmp.eq.s32.totalorder %s14, 0
      %p158 = por %p156, %p157
      %p159 = scmp.ne.s32.totalorder %s148, %s151
      %p160 = scmp.eq.s32.totalorder %s19, 1
      %p161 = por %p159, %p160
      %p162 = scmp.ne.s32.totalorder %s151, %s152
      %p163 = scmp.eq.s32.totalorder %s19, 0
      %p164 = por %p162, %p163
      %p165 = scmp.ne.s32.totalorder %s151, %s152
      %p166 = scmp.eq.s32.totalorder %s20, 1
      %p167 = por %p165, %p166
      %p169 = scmp.ne.s32.totalorder %s152, %s168
      %p170 = scmp.eq.s32.totalorder %s20, 0
      %p171 = por %p169, %p170
      %p172 = scmp.le.s32.totalorder 1, %s14
      %p173 = scmp.lt.s32.totalorder %s14, 3
      %p174 = pnand %p172, %p173
      %p175 = pneg %p174
      // Predicated region
      $region9: #{tpu_custom_call.1} parent=5 // pred_check
        _
      $region10: #{tpu_custom_call.1} parent=5 // pred_check_branch
        %177 = sbr.rel (%p174) target = $region12
      $region11: #{tpu_custom_call.1} parent=5 // pred_region
        %s178 = ssub.s32 %s14, 1
        // Predicated region
        $region13: #{tpu_custom_call.1} parent=11 // pred_check
          %p179 = pneg %p75
        $region14: #{tpu_custom_call.1} parent=11 // pred_check_branch
          %181 = sbr.rel (%p179) target = $region16
        $region15: #{tpu_custom_call.1} parent=11 // pred_region
          _
        $region16: #{tpu_custom_call.1} parent=11 // pred_fallthru
          _
        // Predicated region
        $region17: #{tpu_custom_call.1} parent=11 // pred_check
          %p182 = pneg %p96
        $region18: #{tpu_custom_call.1} parent=11 // pred_check_branch
          %184 = sbr.rel (%p182) target = $region20
        $region19: #{tpu_custom_call.1} parent=11 // pred_region
          _
        $region20: #{tpu_custom_call.1} parent=11 // pred_fallthru
          _
        // Predicated region
        $region21: #{tpu_custom_call.1} parent=11 // pred_check
          %p185 = pneg %p117
        $region22: #{tpu_custom_call.1} parent=11 // pred_check_branch
          %187 = sbr.rel (%p185) target = $region24
        $region23: #{tpu_custom_call.1} parent=11 // pred_region
          _
        $region24: #{tpu_custom_call.1} parent=11 // pred_fallthru
          _
        // Predicated region
        $region25: #{tpu_custom_call.1} parent=11 // pred_check
          %p188 = pneg %p138
        $region26: #{tpu_custom_call.1} parent=11 // pred_check_branch
          %190 = sbr.rel (%p188) target = $region28
        $region27: #{tpu_custom_call.1} parent=11 // pred_region
          _
        $region28: #{tpu_custom_call.1} parent=11 // pred_fallthru
          _
      $region12: #{tpu_custom_call.1} parent=5 // pred_fallthru
        _
      %p191 = scmp.lt.s32.totalorder %s14, 2
      // Predicated region
      $region29: #{tpu_custom_call.1} parent=5 // pred_check
        %p192 = pneg %p191
      $region30: #{tpu_custom_call.1} parent=5 // pred_check_branch
        %194 = sbr.rel (%p192) target = $region32
      $region31: #{tpu_custom_call.1} parent=5 // pred_region
        // Predicated region
        $region33: #{tpu_custom_call.1} parent=31 // pred_check
          %p195 = pneg %p48
        $region34: #{tpu_custom_call.1} parent=31 // pred_check_branch
          %197 = sbr.rel (%p195) target = $region36
        $region35: #{tpu_custom_call.1} parent=31 // pred_region
          %s198 = sand.u32 %s38, 1
          %s199 = scalar_lea.sflag [#allocation4], %s198
          %s200 = sand.u32 %s38, 1
          %s201 = smul.addr %s200, 32
          %s202 = scalar_lea.vmem [#allocation3], %s201
          %s203 = smul.u32 2, %s22
          %s205 = ssub.s32 512, 512
          %206 = vsyncadd %s199, %s205
          %s207 = smul.addr %s21, 4
          %s208 = sadd.s32 %s203, %s207
          %s209 = smul.addr %s208, 128
          %s210 = scalar_lea.hbm %s0, %s209
          %s211 = sshll.u32 %s202, 4
          %s212 = int_to_ptr.vmem [resolvable:$true] %s211
          %217 = dma.hbm_to_vmem [thread:$0]  %s210, 512, %s212, %s199, 256, 256, 16
        $region36: #{tpu_custom_call.1} parent=31 // pred_fallthru
          _
      $region32: #{tpu_custom_call.1} parent=5 // pred_fallthru
        _
      %p218 = scmp.le.s32.totalorder 1, %s14
      %p219 = scmp.lt.s32.totalorder %s14, 3
      %p220 = pnand %p218, %p219
      %p221 = pneg %p220
      // Predicated region
      $region37: #{tpu_custom_call.1} parent=5 // pred_check
        _
      $region38: #{tpu_custom_call.1} parent=5 // pred_check_branch
        %223 = sbr.rel (%p220) target = $region40
      $region39: #{tpu_custom_call.1} parent=5 // pred_region
        %s224 = ssub.s32 %s14, 1
        %s225 = sand.u32 %s41, 1
        %s226 = scalar_lea.sflag [#allocation4], %s225
        %s227 = sand.u32 %s41, 1
        %s228 = smul.addr %s227, 32
        %s229 = scalar_lea.vmem [#allocation3], %s228
        // Predicated region
        $region41: #{tpu_custom_call.1} parent=39 // pred_check
          %p230 = pneg %p54
        $region42: #{tpu_custom_call.1} parent=39 // pred_check_branch
          %232 = sbr.rel (%p230) target = $region44
        $region43: #{tpu_custom_call.1} parent=39 // pred_region
          %233 = dma.done %s226, 512
        $region44: #{tpu_custom_call.1} parent=39 // pred_fallthru
          _
        %s234 = sand.u32 %s41, 1
        %s235 = scalar_lea.sflag [#allocation4], %s234
        %s236 = sand.u32 %s41, 1
        %s237 = smul.addr %s236, 32
        %s238 = scalar_lea.vmem [#allocation3], %s237
        %p239 = pneg %p54
        %p240 = pneg %p51
        %p241 = pneg %p75
        %p242 = pneg %p72
        %p243 = pneg %p96
        %p244 = pneg %p93
        %p245 = pneg %p117
        %p246 = pneg %p114
        %p247 = pneg %p138
        %p248 = pneg %p135
        %p249 = pneg %p164
        %p250 = pneg %p161
        %p251 = scmp.lt.s32.totalorder %s23, 1
        %s252 = scalar_select %p251, %s23, 1
        %s253 = smul.addr %s252, 2
        %s254 = smul.addr %s253, 8
        %s255 = scalar_lea.vmem %s5, %s254
        %s256 = smul.u32 2, %s24
        %p257 = scmp.lt.s32.totalorder %s23, 1
        %s258 = scalar_select %p257, %s23, 1
        %s259 = smul.addr %s258, 2
        %s260 = smul.addr %s259, 8
        %s261 = scalar_lea.vmem %s5, %s260
        %p262 = scmp.eq.s32.totalorder %s24, 0
        // Predicated region
        $region45: #{tpu_custom_call.1} parent=39 // pred_check
          %p263 = pneg %p262
        $region46: #{tpu_custom_call.1} parent=39 // pred_check_branch
          %265 = sbr.rel (%p263) target = $region48
        $region47: #{tpu_custom_call.1} parent=39 // pred_region
          %vm266 = vcmask 7168
          %267 = vst.msk [vmem:[#allocation2] sm:$0xff] %vm266, 0.0
          %268 = vst.msk [vmem:[#allocation2 + $0x8] sm:$0xff] %vm266, 0.0
        $region48: #{tpu_custom_call.1} parent=39 // pred_fallthru
          _
        %v269 = vld [vmem:[%s229] sm:$0xff]
        %v270 = vld [vmem:[%s229 + $0x8] sm:$0xff]
        %v271 = vld [vmem:[%s229 + $0x10] sm:$0xff]
        %v272 = vld [vmem:[%s229 + $0x18] sm:$0xff]
        %v273 = vld [vmem:[#allocation2] sm:$0xff]
        %v274 = vld [vmem:[#allocation2 + $0x8] sm:$0xff]
        %v275 = vadd.f32 %v269, %v270
        %276 = vadd.xlane.f32.xlu0 %v275
        %v277 = vpop.xlane.xlu0 %276
        %v278 = vadd.f32 %v271, %v272
        %279 = vadd.xlane.f32.xlu0 %v278
        %v280 = vpop.xlane.xlu0 %279
        %v281 = vadd.f32 %v273, %v277
        %v282 = vadd.f32 %v274, %v280
        %vm283 = vcmask 7168
        %284 = vst.msk [vmem:[#allocation2] sm:$0xff] %vm283, %v281
        %285 = vst.msk [vmem:[#allocation2 + $0x8] sm:$0xff] %vm283, %v282
        // Predicated region
        $region49: #{tpu_custom_call.1} parent=39 // pred_check
          %p286 = pneg %p262
        $region50: #{tpu_custom_call.1} parent=39 // pred_check_branch
          %288 = sbr.rel (%p286) target = $region52
        $region51: #{tpu_custom_call.1} parent=39 // pred_region
          %v289 = vld [vmem:[#allocation2] sm:$0xff]
          %v290 = vld [vmem:[#allocation2 + $0x8] sm:$0xff]
          %v291 = vmul.f32 %v289, 0.00390625
          %v292 = vmul.f32 %v290, 0.00390625
          %v293 = vld [vmem:[%s1] sm:$0xff]
          %v294 = vld [vmem:[%s1 + $0x8] sm:$0xff]
          %296 = vset.pattern.permute.xlu0 0
          %297 = vperm.xlu0 %296, %v291
          %v298 = vpop.permute.xlu0 %297
          %301 = vset.pattern.permute.xlu0 0
          %302 = vperm.xlu0 %301, %v292
          %v303 = vpop.permute.xlu0 %302
          %v305 = vmul.f32 %v293, %v298
          %v306 = vmul.f32 %v294, %v303
          %vm307 = vcmask 15360
          %v308 = vsel %vm307, %v305, 0.0
          %v309 = vsel %vm307, %v306, 0.0
          %v310 = vadd.f32 %v308, %v309
          %v311 = vrot.slane %v310, 4
          %v312 = vadd.f32 %v310, %v311
          %v313 = vrot.slane %v312, 2
          %v314 = vadd.f32 %v312, %v313
          %v315 = vrot.slane %v314, 1
          %v316 = vadd.f32 %v314, %v315
          %v317 = vld [vmem:[%s2] sm:$0x1]
          %v318 = vadd.f32 %v316, %v317
          %v319 = vmax.f32 %v318, 0.0
          %v320 = vld [vmem:[%s3] sm:$0xff]
          %v321 = vld [vmem:[%s3 + $0x8] sm:$0xff]
          %v322 = vlaneseq
          %v323 = vshrl.u32 %v322, 7
          %v324 = vsub.s32 0, %v323
          %v325 = vrot.slane %v319, %v324
          %v326 = vmul.f32 %v320, %v325
          %v327 = vmul.f32 %v321, %v325
          %v328 = vsel %vm307, %v326, 0.0
          %329 = vadd.xlane.f32.xlu0 %v328
          %v330 = vpop.xlane.xlu0 %329
          %v331 = vsel %vm307, %v327, 0.0
          %332 = vadd.xlane.f32.xlu0 %v331
          %v333 = vpop.xlane.xlu0 %332
          %v334 = vld [vmem:[%s4] sm:$0xff]
          %v335 = vld [vmem:[%s4 + $0x8] sm:$0xff]
          %v336 = vadd.f32 %v330, %v334
          %v337 = vadd.f32 %v333, %v335
          %v338 = vxor.u32 %v336, 2147483648
          %v339 = vxor.u32 %v337, 2147483648
          %v340 = vmul.f32 %v338, 1.442695
          %v341 = vpow.pop %v340
          %v342 = vmul.f32 %v339, 1.442695
          %v343 = vpow.pop %v342
          %v344 = vadd.f32 %v341, 1.0
          %v345 = vadd.f32 %v343, 1.0
          %v346 = vrcp.pop %v344
          %v347 = vmul.f32 1.0, %v346
          %v348 = vrcp.pop %v345
          %v349 = vmul.f32 1.0, %v348
          %350 = vst.msk [vmem:[%s261] sm:$0xff] %vm283, %v347
          %351 = vst.msk [vmem:[%s261 + $0x8] sm:$0xff] %vm283, %v349
        $region52: #{tpu_custom_call.1} parent=39 // pred_fallthru
          _
        %p352 = scmp.lt.s32.totalorder %s23, 1
        %s353 = scalar_select %p352, %s23, 1
        %s354 = smul.addr %s353, 2
        %s355 = smul.addr %s354, 8
        %s356 = scalar_lea.vmem %s5, %s355
        // Predicated region
        $region53: #{tpu_custom_call.1} parent=39 // pred_check
          %p357 = pneg %p161
        $region54: #{tpu_custom_call.1} parent=39 // pred_check_branch
          %359 = sbr.rel (%p357) target = $region56
        $region55: #{tpu_custom_call.1} parent=39 // pred_region
          _
        $region56: #{tpu_custom_call.1} parent=39 // pred_fallthru
          _
      $region40: #{tpu_custom_call.1} parent=5 // pred_fallthru
        _
      %p360 = scmp.le.s32.totalorder 2, %s14
      // Predicated region
      $region57: #{tpu_custom_call.1} parent=5 // pred_check
        %p361 = pneg %p360
      $region58: #{tpu_custom_call.1} parent=5 // pred_check_branch
        %363 = sbr.rel (%p361) target = $region60
      $region59: #{tpu_custom_call.1} parent=5 // pred_region
        %s364 = ssub.s32 %s14, 2
        // Predicated region
        $region61: #{tpu_custom_call.1} parent=59 // pred_check
          %p365 = pneg %p167
        $region62: #{tpu_custom_call.1} parent=59 // pred_check_branch
          %367 = sbr.rel (%p365) target = $region64
        $region63: #{tpu_custom_call.1} parent=59 // pred_region
          %p368 = scmp.lt.s32.totalorder %s25, 1
          %s369 = scalar_select %p368, %s25, 1
          %s370 = smul.addr %s369, 2
          %s371 = smul.addr %s370, 8
          %s372 = scalar_lea.vmem %s5, %s371
        $region64: #{tpu_custom_call.1} parent=59 // pred_fallthru
          _
      $region60: #{tpu_custom_call.1} parent=5 // pred_fallthru
        _
    $region6: #{tpu_custom_call.1} parent=1 // loop_footer
      %s18 = sadd.s32 1, %s14
    $region7: #{tpu_custom_call.1} parent=1 // loop_footer_branch
      %13 = sbr.rel target = $region3
    $region8: #{tpu_custom_call.1} parent=1 // loop_exit
      _
    %373 = vsyncpa [#allocation4], 1
    %s374 = scalar_lea.sflag [#allocation4], 1
    %375 = vsyncpa %s374, 1

</llo_original>
